<compile_context>
chip_gen: v6e
topology: v6e:2x2x1
jax: 0.10.0
libtpu: 0.0.40
codegen_flags: <defaults>
</compile_context>

<pallas_src>
import functools

import jax
import jax.numpy as jnp
from jax.experimental import pallas as pl
from jax.experimental.pallas import tpu as pltpu

_MIB = 1024 * 1024


def _abs_pow(d, p):
    """|d| ** p, avoiding the exp/log EUP pow path for small integer p."""
    if p == 2:
        return d * d                       # squaring makes abs redundant
    if p == 1:
        return jnp.abs(d)
    if isinstance(p, int) and 1 <= p <= 16:
        if p % 2 == 0:                     # even p: no abs needed
            base = d * d
            acc = base
            for _ in range(p // 2 - 1):
                acc = acc * base
            return acc
        base = jnp.abs(d)                  # odd p: one abs + (p-1) multiplies
        acc = base
        for _ in range(p - 1):
            acc = acc * base
        return acc
    return jnp.abs(d) ** jnp.float32(p)    # general float p


# ---------------------------------------------------------------------------
# Main path: (B, C, HW/128, 128) sublane-dense layout.
# ---------------------------------------------------------------------------
def _angle_reg_kernel_4d(scale_ref, x_ref, o_ref, acc_ref, *,
                         p, r_rows, s_tile, inner):
    oi = pl.program_id(1)
    ti = pl.program_id(2)

    @pl.when(ti == 0)
    def _init():
        acc_ref[...] = jnp.zeros_like(acc_ref)

    x = x_ref[...].astype(jnp.float32)            # (C, S_TILE, 128)
    # Channel reduce over the leading (untiled) axis: elementwise VPU adds,
    # result is sublane+lane dense -> all downstream ops run on dense vregs.
    ssq = jnp.sum(x * x, axis=0)                  # (S_TILE, 128)
    r = jnp.sqrt(ssq)
    d = r - scale_ref[0]
    dp = _abs_pow(d, p)                           # (S_TILE, 128)

    if r_rows % s_tile != 0:
        # Only the single global-last spatial tile is partial: gate the mask
        # behind pl.when so every other grid step is a plain VPU accumulate.
        last_tile = r_rows // s_tile
        valid = r_rows - last_tile * s_tile
        g = oi * inner + ti

        @pl.when(g != last_tile)
        def _acc_full():
            acc_ref[...] += dp

        @pl.when(g == last_tile)
        def _acc_tail():
            row = jax.lax.broadcasted_iota(jnp.int32, (s_tile, 128), 0)
            mask = row < valid
            # Mask BEFORE the nonlinearity so padded/stale rows never feed
            # sqrt/pow; runs only on this one step.
            d_m = jnp.sqrt(jnp.where(mask, ssq, 0.0)) - scale_ref[0]
            acc_ref[...] += jnp.where(mask, _abs_pow(d_m, p), 0.0)
    else:
        acc_ref[...] += dp                        # hot path: pure VPU add

    @pl.when(ti == inner - 1)
    def _finalize():
        # Single cross-lane/sublane reduce per (batch row, spatial chunk).
        o_ref[...] = jnp.sum(acc_ref[...]).reshape(1, 1).astype(o_ref.dtype)


# ---------------------------------------------------------------------------
# Fallback path (HW % 128 != 0): (B, C, HW) lane-tiled layout.
# ---------------------------------------------------------------------------
def _angle_reg_kernel_3d(scale_ref, x_ref, o_ref, acc_ref, *,
                         p, hw, ts, num_tiles):
    t = pl.program_id(1)

    @pl.when(t == 0)
    def _init():
        acc_ref[...] = jnp.zeros_like(acc_ref)

    x = x_ref[...].astype(jnp.float32)            # (C, TS)
    ssq = jnp.sum(x * x, axis=0, keepdims=True)   # (1, TS) (XLU reduce; fallback only)
    r = jnp.sqrt(ssq)
    d = r - scale_ref[0]
    dp = _abs_pow(d, p)

    if hw % ts != 0:
        valid = hw - (num_tiles - 1) * ts

        @pl.when(t != num_tiles - 1)
        def _acc_full():
            acc_ref[...] += dp

        @pl.when(t == num_tiles - 1)
        def _acc_tail():
            lane = jax.lax.broadcasted_iota(jnp.int32, (1, ts), 1)
            mask = lane < valid
            d_m = jnp.sqrt(jnp.where(mask, ssq, 0.0)) - scale_ref[0]
            acc_ref[...] += jnp.where(mask, _abs_pow(d_m, p), 0.0)
    else:
        acc_ref[...] += dp

    @pl.when(t == num_tiles - 1)
    def _finalize():
        o_ref[...] = jnp.sum(acc_ref[...]).reshape(1, 1).astype(o_ref.dtype)


# ---------------------------------------------------------------------------
# Wrapper.
# ---------------------------------------------------------------------------
def _default_target_block_bytes():
    # HBM-streaming-bound kernel: tile size tuned per generation.
    #   v5e (~0.8 TB/s): ~2 MiB already sits near roofline; don't chase more.
    #   v6e (~1.4 TB/s): ~4 MiB (measured ~86% of roofline).
    #   v7x (~3.2 TB/s): ~8 MiB so the ~0.35us/step fixed cost stays small.
    try:
        kind = jax.devices()[0].device_kind.lower()
    except Exception:
        return 4 * _MIB
    if "v7" in kind:
        return 8 * _MIB
    if "v5" in kind:
        return 2 * _MIB
    return 4 * _MIB


def angle_regularizer(batch, *, strength=1.0, scale=1.0, p=2,
                      target_block_bytes=None):
    """batch: (B, C, *spatial) in native layout. Returns a float32 scalar."""
    batch = jnp.asarray(batch)
    assert batch.ndim >= 2, "need at least (B, C)"
    b = int(batch.shape[0])
    c = int(batch.shape[1])
    hw = 1
    for s in batch.shape[2:]:
        hw *= int(s)

    if target_block_bytes is None:
        target_block_bytes = _default_target_block_bytes()
    itemsize = jnp.dtype(batch.dtype).itemsize
    # scale lives in SMEM so annealing it does not trigger a Mosaic recompile.
    scale_arr = jnp.reshape(jnp.asarray(scale, jnp.float32), (1,))

    if hw % 128 == 0 and hw > 0:
        # ---------------- main sublane-dense path ----------------
        r_rows = hw // 128
        x4d = batch.reshape(b, c, r_rows, 128)     # row-major contiguous: free

        # Sublane tile over spatial rows: multiple of 8, sized so the
        # (C, S_TILE, 128) input block hits the per-generation byte target.
        # TODO(synk): add a channel-chunk grid axis (accumulate ssq, apply
        # sqrt/pow on the last chunk) if C alone overflows the VMEM budget.
        row_bytes = c * 128 * itemsize
        s_cap = max(8, (target_block_bytes // row_bytes) // 8 * 8)
        s_tile = r_rows if r_rows <= s_cap else s_cap
        num_tiles = -(-r_rows // s_tile)            # cdiv

        # When B == 1, split the spatial loop into two parallel chunks so both
        # TensorCores (v7x megacore) get work.
        n_outer = 2 if (b == 1 and num_tiles >= 2 and num_tiles % 2 == 0) else 1
        inner = num_tiles // n_outer

        kernel = functools.partial(_angle_reg_kernel_4d, p=p, r_rows=r_rows,
                                   s_tile=s_tile, inner=inner)
        partials = pl.pallas_call(
            kernel,
            out_shape=jax.ShapeDtypeStruct((b * n_outer, 1, 1), jnp.float32),
            grid_spec=pltpu.PrefetchScalarGridSpec(
                num_scalar_prefetch=0,
                grid=(b, n_outer, inner),
                in_specs=[
                    pl.BlockSpec(memory_space=pltpu.MemorySpace.SMEM),
                    pl.BlockSpec((pl.Squeezed(), c, s_tile, 128),
                                 lambda bi, oi, ti: (bi, 0, oi * inner + ti, 0)),
                ],
                out_specs=pl.BlockSpec((pl.Squeezed(), 1, 1),
                                       lambda bi, oi, ti: (bi * n_outer + oi, 0, 0)),
                scratch_shapes=[pltpu.VMEM((s_tile, 128), jnp.float32)],
            ),
            compiler_params=pltpu.CompilerParams(
                dimension_semantics=("parallel", "parallel", "arbitrary"),
                vmem_limit_bytes=32 * _MIB,
            ),
        )(scale_arr, x4d)
    else:
        # ---------------- fallback lane-tiled path ----------------
        x3d = batch.reshape(b, c, hw)
        if hw <= 128:
            ts = hw                                 # full lane dim: always legal
        else:
            ts_cap = max(128, (target_block_bytes // (c * itemsize)) // 128 * 128)
            ts_cap = min(ts_cap, 32 * 1024)         # bound the (1, TS) accumulator
            ts = min(ts_cap, (hw // 128) * 128)
        num_tiles = -(-hw // ts)

        kernel = functools.partial(_angle_reg_kernel_3d, p=p, hw=hw, ts=ts,
                                   num_tiles=num_tiles)
        partials = pl.pallas_call(
            kernel,
            out_shape=jax.ShapeDtypeStruct((b, 1, 1), jnp.float32),
            grid_spec=pltpu.PrefetchScalarGridSpec(
                num_scalar_prefetch=0,
                grid=(b, num_tiles),
                in_specs=[
                    pl.BlockSpec(memory_space=pltpu.MemorySpace.SMEM),
                    pl.BlockSpec((pl.Squeezed(), c, ts),
                                 lambda bi, ti: (bi, 0, ti)),
                ],
                out_specs=pl.BlockSpec((pl.Squeezed(), 1, 1),
                                       lambda bi, ti: (bi, 0, 0)),
                scratch_shapes=[pltpu.VMEM((1, ts), jnp.float32)],
            ),
            compiler_params=pltpu.CompilerParams(
                dimension_semantics=("parallel", "arbitrary"),
                vmem_limit_bytes=32 * _MIB,
            ),
        )(scale_arr, x3d)

    # Tiny epilogue over the handful of partial sums: sum, p-th root, scale.
    total = jnp.sum(partials)
    if p == 2:
        res = jnp.sqrt(total)
    elif p == 1:
        res = total
    else:
        res = total ** (1.0 / float(p))
    return (jnp.asarray(strength, jnp.float32) * res).reshape(())


def _reference(batch, strength=1.0, scale=1.0, p=2):
    r = jnp.sqrt(jnp.sum(batch.astype(jnp.float32) ** 2, axis=1))
    d = jnp.abs(r - scale)
    return strength * jnp.sum(d ** p) ** (1.0 / p)


if __name__ == "__main__":
    key = jax.random.PRNGKey(0)
    k1, k2, k3 = jax.random.split(key, 3)

    # 1) NCHW input, HW % 128 == 0 -> main sublane-dense path.
    x = jax.random.normal(k1, (2, 4, 16, 16), dtype=jnp.float32)
    out = jax.block_until_ready(angle_regularizer(x, strength=1.0, scale=1.0, p=2))
    ref = _reference(x, strength=1.0, scale=1.0, p=2)
    assert jnp.allclose(out, ref, rtol=1e-4, atol=1e-5), (out, ref)

    # 2) B == 1 with a partial last spatial tile: exercises the two parallel
    #    spatial chunks (both v7x TensorCores) and the pl.when-gated tail mask.
    xt = jax.random.normal(k2, (1, 4, 60, 128), dtype=jnp.float32)
    out_t = jax.block_until_ready(
        angle_regularizer(xt, strength=1.0, scale=1.0, p=2,
                          target_block_bytes=16 * 1024))
    ref_t = _reference(xt, strength=1.0, scale=1.0, p=2)
    assert jnp.allclose(out_t, ref_t, rtol=1e-4, atol=1e-5), (out_t, ref_t)

    # 3) HW % 128 != 0 fallback path, odd p, non-default scale/strength.
    xf = jax.random.normal(k3, (2, 4, 10, 10), dtype=jnp.float32)
    out_f = jax.block_until_ready(
        angle_regularizer(xf, strength=2.0, scale=0.5, p=3))
    ref_f = _reference(xf, strength=2.0, scale=0.5, p=3)
    assert jnp.allclose(out_f, ref_f, rtol=1e-4, atol=1e-5), (out_f, ref_f)

    print("KERNEL_OK")
</pallas_src>

<mosaic_0001>
module attributes {stable_mosaic.version = 11 : i64} {
  func.func @_angle_reg_kernel_4d(%arg0: i32, %arg1: i32, %arg2: i32, %arg3: memref<1xf32, #tpu.memory_space<smem>>, %arg4: memref<1x4x2x128xf32, #tpu.memory_space<vmem>>, %arg5: memref<1x1x1xf32, #tpu.memory_space<vmem>>, %arg6: memref<2x128xf32, #tpu.memory_space<vmem>>) attributes {dimension_semantics = [#tpu.dimension_semantics<parallel>, #tpu.dimension_semantics<parallel>, #tpu.dimension_semantics<arbitrary>], iteration_bounds = array<i64: 2, 1, 1>, scalar_prefetch = 0 : i64, scratch_operands = 1 : i64, tpu.core_type = #tpu.core_type<tc>, window_params = [{transform_indices = @transform_0, window_bounds = array<i64: 1>}, {transform_indices = @transform_1, window_bounds = array<i64: 1, 4, 2, 128>}, {transform_indices = @transform_2, window_bounds = array<i64: 1, 1, 1>}]} {
    %c0_i32 = arith.constant 0 : i32
    %0 = arith.cmpi eq, %arg2, %c0_i32 : i32
    %1 = arith.extui %0 : i1 to i32
    %c0_i32_0 = arith.constant 0 : i32
    %2 = arith.cmpi ne, %1, %c0_i32_0 : i32
    scf.if %2 {
      %cst_11 = arith.constant 0.000000e+00 : f32
      %18 = vector.broadcast %cst_11 : f32 to vector<2x128xf32>
      %c0_12 = arith.constant 0 : index
      %c0_13 = arith.constant 0 : index
      %19 = vector.load %arg6[%c0_12, %c0_13] : memref<2x128xf32, #tpu.memory_space<vmem>>, vector<2x128xf32>
      tpu.vector_store %arg6[%c0_12, %c0_13], %18 {strides = array<i32>} : memref<2x128xf32, #tpu.memory_space<vmem>>, vector<2x128xf32>,
    } else {
    }
    %c0 = arith.constant 0 : index
    %c0_1 = arith.constant 0 : index
    %c0_2 = arith.constant 0 : index
    %c0_3 = arith.constant 0 : index
    %3 = vector.load %arg4[%c0, %c0_1, %c0_2, %c0_3] : memref<1x4x2x128xf32, #tpu.memory_space<vmem>>, vector<1x4x2x128xf32>
    %4 = vector.shape_cast %3 : vector<1x4x2x128xf32> to vector<4x2x128xf32>
    %5 = arith.mulf %4, %4 : vector<4x2x128xf32>
    %cst = arith.constant dense<0.000000e+00> : vector<2x128xf32>
    %6 = vector.multi_reduction <add>, %5, %cst [0] : vector<4x2x128xf32> to vector<2x128xf32>
    %7 = math.sqrt %6 : vector<2x128xf32>
    %c0_4 = arith.constant 0 : index
    %8 = memref.load %arg3[%c0_4] : memref<1xf32, #tpu.memory_space<smem>>
    %9 = vector.broadcast %8 : f32 to vector<2x128xf32>
    %10 = arith.subf %7, %9 : vector<2x128xf32>
    %11 = arith.mulf %10, %10 : vector<2x128xf32>
    %c0_5 = arith.constant 0 : index
    %c0_6 = arith.constant 0 : index
    %12 = vector.load %arg6[%c0_5, %c0_6] : memref<2x128xf32, #tpu.memory_space<vmem>>, vector<2x128xf32>
    %13 = arith.addf %12, %11 : vector<2x128xf32>
    %c0_7 = arith.constant 0 : index
    %c0_8 = arith.constant 0 : index
    %14 = vector.load %arg6[%c0_7, %c0_8] : memref<2x128xf32, #tpu.memory_space<vmem>>, vector<2x128xf32>
    tpu.vector_store %arg6[%c0_7, %c0_8], %13 {strides = array<i32>} : memref<2x128xf32, #tpu.memory_space<vmem>>, vector<2x128xf32>,
    %c0_i32_9 = arith.constant 0 : i32
    %15 = arith.cmpi eq, %arg2, %c0_i32_9 : i32
    %16 = arith.extui %15 : i1 to i32
    %c0_i32_10 = arith.constant 0 : i32
    %17 = arith.cmpi ne, %16, %c0_i32_10 : i32
    scf.if %17 {
      %c0_11 = arith.constant 0 : index
      %c0_12 = arith.constant 0 : index
      %18 = vector.load %arg6[%c0_11, %c0_12] : memref<2x128xf32, #tpu.memory_space<vmem>>, vector<2x128xf32>
      %19 = vector.shape_cast %18 : vector<2x128xf32> to vector<1x2x128xf32>
      %cst_13 = arith.constant dense<0.000000e+00> : vector<1xf32>
      %20 = vector.multi_reduction <add>, %19, %cst_13 [1, 2] : vector<1x2x128xf32> to vector<1xf32>
      %21 = vector.shape_cast %20 : vector<1xf32> to vector<1x1x1xf32>
      %22 = vector.extract %21[0, 0, 0] : f32 from vector<1x1x1xf32>
      %23 = vector.broadcast %22 : f32 to vector<1x1xf32>
      %c0_14 = arith.constant 0 : index
      %c0_15 = arith.constant 0 : index
      %c0_16 = arith.constant 0 : index
      %24 = vector.load %arg5[%c0_14, %c0_15, %c0_16] : memref<1x1x1xf32, #tpu.memory_space<vmem>>, vector<1x1x1xf32>
      %25 = vector.shape_cast %24 : vector<1x1x1xf32> to vector<1x1xf32>
      %26 = vector.shape_cast %23 : vector<1x1xf32> to vector<1x1x1xf32>
      tpu.vector_store %arg5[%c0_14, %c0_15, %c0_16], %26 {strides = array<i32>} : memref<1x1x1xf32, #tpu.memory_space<vmem>>, vector<1x1x1xf32>,
    } else {
    }
    return
  }
  func.func @transform_0(%arg0: i32, %arg1: i32, %arg2: i32) -> i32 {
    %c0_i32 = arith.constant 0 : i32
    %c0_i32_0 = arith.constant 0 : i32
    return %c0_i32 : i32
  }
  func.func @transform_1(%arg0: i32, %arg1: i32, %arg2: i32) -> (i32, i32, i32, i32) {
    %c1_i32 = arith.constant 1 : i32
    %0 = arith.muli %arg1, %c1_i32 : i32
    %1 = arith.addi %0, %arg2 : i32
    %c0_i32 = arith.constant 0 : i32
    %c0_i32_0 = arith.constant 0 : i32
    %c0_i32_1 = arith.constant 0 : i32
    return %arg0, %c0_i32, %1, %c0_i32_0 : i32, i32, i32, i32
  }
  func.func @transform_2(%arg0: i32, %arg1: i32, %arg2: i32) -> (i32, i32, i32) {
    %c1_i32 = arith.constant 1 : i32
    %0 = arith.muli %arg0, %c1_i32 : i32
    %1 = arith.addi %0, %arg1 : i32
    %c0_i32 = arith.constant 0 : i32
    %c0_i32_0 = arith.constant 0 : i32
    %c0_i32_1 = arith.constant 0 : i32
    return %1, %c0_i32, %c0_i32_0 : i32, i32, i32
  }
}

</mosaic_0001>

<llo_original>
// kernel: tpu_custom_call.1
$region0: #{tpu_custom_call.1}
  #allocation0 [shape = 'u32[]', space=smem, size = 0x4, offset = 0x4, fixed_abs, tag = 'smem constant byte address 0x4 - core index']
  #allocation1 [shape = 'u32[144,128]{1,0:T(1,128)}', space=vmem, size = 0x12000, scoped, tag = 'internal scratch']
  #allocation2 [shape = 'f32[2,128]{1,0:T(2,128)}', space=vmem, size = 0x400, scoped, tag = 'scratch operand']
  #allocation3 [shape = 'f32[1]{0:T(128)S(6)}', space=smem, size = 0x200, scoped, tag = 'scoped memory for tpu_custom_call.1']
  %s0 = inlined_call_operand.<no memory space> [shape: f32[1], index: 0, kind: input, shape index: {}]
  %s1 = inlined_call_operand.hbm [shape: f32[2,4,2,128], index: 1, kind: input, shape index: {}]
  %s2 = inlined_call_operand.vmem [shape: f32[2,1,1], index: 2, kind: output, shape index: {}]
  %s3 = sld [smem:[#allocation0]]
  $region53: #{tpu_custom_call.1} parent=0
    _
  %s5 = ssub.s32 1, %s3
  %s6 = scalar_select 0, %s5, %s3
  %7 = sst [smem:[#allocation3]] %s0
  $region1: #{tpu_custom_call.1} parent=0
    #allocation4 [shape = 'u8[8192]{0}', space=vmem, size = 0x2000, scoped, tag = 'input window, operand 1']
    #allocation5 [shape = 's32[2]{0}', space=sflag, size = 0x8, scoped, tag = 'scoped memory for tpu_custom_call.1']
    %8 = vsyncpa [#allocation5], 0
    %s9 = scalar_lea.sflag [#allocation5], 1
    %10 = vsyncpa %s9, 0
    loop: start=0, step=1, limit=4
    $region2: #{tpu_custom_call.1} parent=1 // loop_pre_header
      _
    $region3: #{tpu_custom_call.1} parent=1 // loop_header
      %s12 = sphi 0, %s16
      %p13 = scmp.ge.s32.totalorder %s12, 4
      %s19 = sphi 0, %s38
      %s20 = sphi 0, %s34
      %s21 = sphi 0, %s30
      %s22 = sphi 0, %s19
      %s23 = sphi 0, %s20
      %s24 = sphi 0, %s21
      %s25 = sphi 0, %s22
      %s26 = sphi 0, %s23
      %s27 = sphi 0, %s24
      %s39 = sphi 0, %s39
      %s41 = sphi 0, %s39
      %s42 = sphi 0, %s41
      %s56 = sphi 0, %s42
      %s66 = sphi 0, %s68
      %s69 = sphi 0, %s66
      %s70 = sphi 0, %s69
      %s86 = sphi 0, %s70
      %s94 = sphi 0, %s96
      %s97 = sphi 0, %s94
      %s98 = sphi 0, %s97
      %s114 = sphi 0, %s98
    $region4: #{tpu_custom_call.1} parent=1 // loop_header_branch
      %15 = sbr.rel (%p13) target = $region8
    $region5: #{tpu_custom_call.1} parent=1 // loop_body
      %s17 = ssub.s32 %s12, 1
      %s18 = ssub.s32 %s12, 2
      %s28 = sadd.s32 1, %s21
      %p29 = scmp.ge.s32.totalorder %s28, 1
      %s30 = scalar_select %p29, 0, %s28
      %s31 = sadd.s32 1, %s20
      %s32 = scalar_select %p29, %s31, %s20
      %p33 = scmp.ge.s32.totalorder %s32, 1
      %s34 = scalar_select %p33, 0, %s32
      %s35 = sadd.s32 1, %s19
      %s36 = scalar_select %p33, %s35, %s19
      %p37 = scmp.ge.s32.totalorder %s36, 2
      %s38 = scalar_select %p37, 0, %s36
      %s40 = sadd.s32 %s39, 1
      %p43 = scmp.eq.s32.totalorder %s12, 1
      %p44 = scmp.ne.s32.totalorder %s39, %s41
      %p45 = scmp.eq.s32.totalorder %s12, 0
      %p46 = por %p44, %p45
      %p47 = scmp.ne.s32.totalorder %s39, %s41
      %p48 = scmp.eq.s32.totalorder %s17, 1
      %p49 = por %p47, %p48
      %p50 = scmp.ne.s32.totalorder %s41, %s42
      %p51 = scmp.eq.s32.totalorder %s17, 0
      %p52 = por %p50, %p51
      %p53 = scmp.ne.s32.totalorder %s41, %s42
      %p54 = scmp.eq.s32.totalorder %s18, 1
      %p55 = por %p53, %p54
      %p57 = scmp.ne.s32.totalorder %s42, %s56
      %p58 = scmp.eq.s32.totalorder %s18, 0
      %p59 = por %p57, %p58
      %s60 = sadd.s32 %s20, %s21
      %s61 = sadd.s32 %s34, %s30
      %s62 = ssub.s32 %s19, %s38
      %s63 = ssub.s32 %s60, %s61
      %s64 = sor.u32 %s62, %s63
      %p65 = scmp.eq.s32.totalorder %s64, 0
      %s67 = sadd.s32 %s66, 1
      %s68 = scalar_select %p65, %s66, %s67
      %p71 = pneg %p65
      %p72 = scmp.eq.s32.totalorder %s12, 1
      %p73 = por %p71, %p72
      %p74 = scmp.ne.s32.totalorder %s66, %s69
      %p75 = scmp.eq.s32.totalorder %s12, 0
      %p76 = por %p74, %p75
      %p77 = scmp.ne.s32.totalorder %s66, %s69
      %p78 = scmp.eq.s32.totalorder %s17, 1
      %p79 = por %p77, %p78
      %p80 = scmp.ne.s32.totalorder %s69, %s70
      %p81 = scmp.eq.s32.totalorder %s17, 0
      %p82 = por %p80, %p81
      %p83 = scmp.ne.s32.totalorder %s69, %s70
      %p84 = scmp.eq.s32.totalorder %s18, 1
      %p85 = por %p83, %p84
      %p87 = scmp.ne.s32.totalorder %s70, %s86
      %p88 = scmp.eq.s32.totalorder %s18, 0
      %p89 = por %p87, %p88
      %s90 = sadd.s32 %s19, %s20
      %s91 = sadd.s32 %s38, %s34
      %s92 = ssub.s32 %s90, %s91
      %p93 = scmp.eq.s32.totalorder %s92, 0
      %s95 = sadd.s32 %s94, 1
      %s96 = scalar_select %p93, %s94, %s95
      %p99 = pneg %p93
      %p100 = scmp.eq.s32.totalorder %s12, 1
      %p101 = por %p99, %p100
      %p102 = scmp.ne.s32.totalorder %s94, %s97
      %p103 = scmp.eq.s32.totalorder %s12, 0
      %p104 = por %p102, %p103
      %p105 = scmp.ne.s32.totalorder %s94, %s97
      %p106 = scmp.eq.s32.totalorder %s17, 1
      %p107 = por %p105, %p106
      %p108 = scmp.ne.s32.totalorder %s97, %s98
      %p109 = scmp.eq.s32.totalorder %s17, 0
      %p110 = por %p108, %p109
      %p111 = scmp.ne.s32.totalorder %s97, %s98
      %p112 = scmp.eq.s32.totalorder %s18, 1
      %p113 = por %p111, %p112
      %p115 = scmp.ne.s32.totalorder %s98, %s114
      %p116 = scmp.eq.s32.totalorder %s18, 0
      %p117 = por %p115, %p116
      %p118 = scmp.le.s32.totalorder 1, %s12
      %p119 = scmp.lt.s32.totalorder %s12, 3
      %p120 = pnand %p118, %p119
      %p121 = pneg %p120
      // Predicated region
      $region9: #{tpu_custom_call.1} parent=5 // pred_check
        _
      $region10: #{tpu_custom_call.1} parent=5 // pred_check_branch
        %123 = sbr.rel (%p120) target = $region12
      $region11: #{tpu_custom_call.1} parent=5 // pred_region
        %s124 = ssub.s32 %s12, 1
        // Predicated region
        $region13: #{tpu_custom_call.1} parent=11 // pred_check
          %p125 = pneg %p52
        $region14: #{tpu_custom_call.1} parent=11 // pred_check_branch
          %127 = sbr.rel (%p125) target = $region16
        $region15: #{tpu_custom_call.1} parent=11 // pred_region
          _
        $region16: #{tpu_custom_call.1} parent=11 // pred_fallthru
          _
      $region12: #{tpu_custom_call.1} parent=5 // pred_fallthru
        _
      %p128 = scmp.lt.s32.totalorder %s12, 2
      // Predicated region
      $region17: #{tpu_custom_call.1} parent=5 // pred_check
        %p129 = pneg %p128
      $region18: #{tpu_custom_call.1} parent=5 // pred_check_branch
        %131 = sbr.rel (%p129) target = $region20
      $region19: #{tpu_custom_call.1} parent=5 // pred_region
        // Predicated region
        $region21: #{tpu_custom_call.1} parent=19 // pred_check
          %p132 = pneg %p76
        $region22: #{tpu_custom_call.1} parent=19 // pred_check_branch
          %134 = sbr.rel (%p132) target = $region24
        $region23: #{tpu_custom_call.1} parent=19 // pred_region
          %s135 = sand.u32 %s66, 1
          %s136 = scalar_lea.sflag [#allocation5], %s135
          %s137 = sand.u32 %s66, 1
          %s138 = smul.addr %s137, 8
          %s139 = scalar_lea.vmem [#allocation4], %s138
          %s140 = sadd.s32 %s20, %s21
          %s142 = ssub.s32 128, 128
          %143 = vsyncadd %s136, %s142
          %s144 = smul.addr %s19, 4
          %s145 = sadd.s32 %s140, %s144
          %s146 = smul.addr %s145, 32
          %s147 = scalar_lea.hbm %s1, %s146
          %s148 = sshll.u32 %s139, 4
          %s149 = int_to_ptr.vmem [resolvable:$true] %s148
          %154 = dma.hbm_to_vmem [thread:$0]  %s147, 128, %s149, %s136, 32, 32, 2
        $region24: #{tpu_custom_call.1} parent=19 // pred_fallthru
          _
      $region20: #{tpu_custom_call.1} parent=5 // pred_fallthru
        _
      %p155 = scmp.le.s32.totalorder 1, %s12
      %p156 = scmp.lt.s32.totalorder %s12, 3
      %p157 = pnand %p155, %p156
      %p158 = pneg %p157
      // Predicated region
      $region25: #{tpu_custom_call.1} parent=5 // pred_check
        _
      $region26: #{tpu_custom_call.1} parent=5 // pred_check_branch
        %160 = sbr.rel (%p157) target = $region28
      $region27: #{tpu_custom_call.1} parent=5 // pred_region
        %s161 = ssub.s32 %s12, 1
        %s162 = sand.u32 %s69, 1
        %s163 = scalar_lea.sflag [#allocation5], %s162
        %s164 = sand.u32 %s69, 1
        %s165 = smul.addr %s164, 8
        %s166 = scalar_lea.vmem [#allocation4], %s165
        // Predicated region
        $region29: #{tpu_custom_call.1} parent=27 // pred_check
          %p167 = pneg %p82
        $region30: #{tpu_custom_call.1} parent=27 // pred_check_branch
          %169 = sbr.rel (%p167) target = $region32
        $region31: #{tpu_custom_call.1} parent=27 // pred_region
          %170 = dma.done %s163, 128
        $region32: #{tpu_custom_call.1} parent=27 // pred_fallthru
          _
        %p171 = pneg %p52
        %p172 = pneg %p49
        %s173 = sand.u32 %s69, 1
        %s174 = scalar_lea.sflag [#allocation5], %s173
        %s175 = sand.u32 %s69, 1
        %s176 = smul.addr %s175, 8
        %s177 = scalar_lea.vmem [#allocation4], %s176
        %p178 = pneg %p82
        %p179 = pneg %p79
        %p180 = pneg %p110
        %p181 = pneg %p107
        %s182 = sadd.s32 %s22, %s23
        %p183 = scmp.lt.s32.totalorder %s182, 1
        %s184 = scalar_select %p183, %s182, 1
        %s185 = scalar_lea.vmem %s2, %s184
        %s186 = sadd.s32 %s23, %s24
        %s187 = sadd.s32 %s22, %s23
        %p188 = scmp.lt.s32.totalorder %s187, 1
        %s189 = scalar_select %p188, %s187, 1
        %s190 = scalar_lea.vmem %s2, %s189
        %s191 = sadd.s32 %s22, %s23
        %p192 = scmp.eq.s32.totalorder %s24, 0
        // Predicated region
        $region33: #{tpu_custom_call.1} parent=27 // pred_check
          %p193 = pneg %p192
        $region34: #{tpu_custom_call.1} parent=27 // pred_check_branch
          %195 = sbr.rel (%p193) target = $region36
        $region35: #{tpu_custom_call.1} parent=27 // pred_region
          %196 = vst [vmem:[#allocation2] sm:$0x3] 0.0
        $region36: #{tpu_custom_call.1} parent=27 // pred_fallthru
          _
        %v197 = vld [vmem:[%s166] sm:$0x3]
        %v198 = vld [vmem:[%s166 + $0x2] sm:$0x3]
        %v199 = vld [vmem:[%s166 + $0x4] sm:$0x3]
        %v200 = vld [vmem:[%s166 + $0x6] sm:$0x3]
        %v201 = vmul.f32 %v197, %v197
        %v202 = vmul.f32 %v198, %v198
        %v203 = vmul.f32 %v199, %v199
        %v204 = vmul.f32 %v200, %v200
        %vm205 = vcmask 1041408
        %v206 = vsel %vm205, %v201, 0.0
        %v207 = vsel %vm205, %v202, 0.0
        %v208 = vadd.f32 %v206, %v207
        %v209 = vsel %vm205, %v203, 0.0
        %v210 = vadd.f32 %v208, %v209
        %v211 = vsel %vm205, %v204, 0.0
        %v212 = vadd.f32 %v210, %v211
        %v213 = vrsqrt.pop %v212
        %v214 = vmul.f32 %v212, %v213
        %vm215 = vcmp.eq.f32.partialorder %v212, inf
        %v216 = vsel %vm215, %v212, %v214
        %vm217 = vcmp.eq.f32.partialorder %v212, 0.0
        %v218 = vand.u32 %v212, 2147483648
        %v219 = vsel %vm217, %v218, %v216
        %s220 = sld [smem:[#allocation3]]
        %v221 = vstv %s220
        %v222 = vsub.f32 %v219, %v221
        %v223 = vmul.f32 %v222, %v222
        %v224 = vld [vmem:[#allocation2] sm:$0x3]
        %v225 = vadd.f32 %v224, %v223
        %226 = vst [vmem:[#allocation2] sm:$0x3] %v225
        // Predicated region
        $region37: #{tpu_custom_call.1} parent=27 // pred_check
          %p227 = pneg %p192
        $region38: #{tpu_custom_call.1} parent=27 // pred_check_branch
          %229 = sbr.rel (%p227) target = $region40
        $region39: #{tpu_custom_call.1} parent=27 // pred_region
          %v230 = vld [vmem:[#allocation2] sm:$0x3]
          %v231 = vsel %vm205, %v230, 0.0
          %232 = vadd.xlane.f32.xlu0 %v231
          %v233 = vpop.xlane.xlu0 %232
          %v234 = vrot.slane %v233, 4
          %v235 = vadd.f32 %v233, %v234
          %v236 = vrot.slane %v235, 2
          %v237 = vadd.f32 %v235, %v236
          %v238 = vrot.slane %v237, 1
          %v239 = vadd.f32 %v237, %v238
          %s240 = vtos %v239
          %v241 = vstv %s240
          %vm242 = vcmask 0
          %243 = vst.msk [vmem:[%s190] sm:$0x1] %vm242, %v241
        $region40: #{tpu_custom_call.1} parent=27 // pred_fallthru
          _
        %s244 = sadd.s32 %s22, %s23
        %p245 = scmp.lt.s32.totalorder %s244, 1
        %s246 = scalar_select %p245, %s244, 1
        %s247 = scalar_lea.vmem %s2, %s246
        // Predicated region
        $region41: #{tpu_custom_call.1} parent=27 // pred_check
          %p248 = pneg %p107
        $region42: #{tpu_custom_call.1} parent=27 // pred_check_branch
          %250 = sbr.rel (%p248) target = $region44
        $region43: #{tpu_custom_call.1} parent=27 // pred_region
          %s251 = sadd.s32 %s22, %s23
        $region44: #{tpu_custom_call.1} parent=27 // pred_fallthru
          _
      $region28: #{tpu_custom_call.1} parent=5 // pred_fallthru
        _
      %p252 = scmp.le.s32.totalorder 2, %s12
      // Predicated region
      $region45: #{tpu_custom_call.1} parent=5 // pred_check
        %p253 = pneg %p252
      $region46: #{tpu_custom_call.1} parent=5 // pred_check_branch
        %255 = sbr.rel (%p253) target = $region48
      $region47: #{tpu_custom_call.1} parent=5 // pred_region
        %s256 = ssub.s32 %s12, 2
        // Predicated region
        $region49: #{tpu_custom_call.1} parent=47 // pred_check
          %p257 = pneg %p113
        $region50: #{tpu_custom_call.1} parent=47 // pred_check_branch
          %259 = sbr.rel (%p257) target = $region52
        $region51: #{tpu_custom_call.1} parent=47 // pred_region
          %s260 = sadd.s32 %s25, %s26
          %p261 = scmp.lt.s32.totalorder %s260, 1
          %s262 = scalar_select %p261, %s260, 1
          %s263 = scalar_lea.vmem %s2, %s262
        $region52: #{tpu_custom_call.1} parent=47 // pred_fallthru
          _
      $region48: #{tpu_custom_call.1} parent=5 // pred_fallthru
        _
    $region6: #{tpu_custom_call.1} parent=1 // loop_footer
      %s16 = sadd.s32 1, %s12
    $region7: #{tpu_custom_call.1} parent=1 // loop_footer_branch
      %11 = sbr.rel target = $region3
    $region8: #{tpu_custom_call.1} parent=1 // loop_exit
      _
    %264 = vsyncpa [#allocation5], 1
    %s265 = scalar_lea.sflag [#allocation5], 1
    %266 = vsyncpa %s265, 1

</llo_original>
